<compile_context>
chip_gen: v5e
topology: v5e:2x2
jax: 0.10.0
libtpu: 0.0.40
codegen_flags: <defaults>
</compile_context>

<pallas_src>
import functools

import jax
import jax.numpy as jnp
from jax import lax
from jax.experimental import pallas as pl
from jax.experimental.pallas import tpu as pltpu


def _round_up(x, m):
    return ((x + m - 1) // m) * m


def mlp_kernel(x_ref,
               w1_ref, b1_ref,
               w2_ref, b2_ref,
               w3_ref, b3_ref,
               w4_ref, b4_ref,
               o_ref,
               *, n_chunks, ch):
    """Fused 4-layer MLP on one batch tile.

    x_ref: (tb, input_dim)  -- native batch-major layout, contiguous HBM reads
    o_ref: (out_dim, tb)    -- batch-in-lanes, lane-dense output stores
    Weights are PyTorch layout (out, in); biases are (out, 1) columns.
    """
    w1 = w1_ref[...]
    w2 = w2_ref[...]
    w3 = w3_ref[...]
    w4 = w4_ref[...]
    # Hoist bias broadcasts out of the chunk loop (JAX does not CSE
    # broadcast_in_dim inside loops).
    b1 = jnp.broadcast_to(b1_ref[...], (w1.shape[0], ch))
    b2 = jnp.broadcast_to(b2_ref[...], (w2.shape[0], ch))
    b3 = jnp.broadcast_to(b3_ref[...], (w3.shape[0], ch))
    b4 = jnp.broadcast_to(b4_ref[...], (w4.shape[0], ch))

    nt = (((1,), (1,)), ((), ()))   # contract last dim of both operands (A @ B.T)

    def chunk(start):
        xc = x_ref[pl.ds(start, ch), :]                        # (ch, input_dim)
        # fc1 + ReLU: (h1, in) x (ch, in)^T -> (h1, ch); batch fills MXU lanes.
        h = jnp.maximum(
            lax.dot_general(w1, xc, nt, preferred_element_type=jnp.float32) + b1,
            0.0)
        # fc2 + ReLU
        h = jnp.maximum(
            jnp.dot(w2, h, preferred_element_type=jnp.float32) + b2, 0.0)
        # fc3 + dropout(p=0 -> identity) + ReLU
        h = jnp.maximum(
            jnp.dot(w3, h, preferred_element_type=jnp.float32) + b3, 0.0)
        # fc4 (no activation) -> lane-dense store into the output tile.
        o_ref[:, pl.ds(start, ch)] = (
            jnp.dot(w4, h, preferred_element_type=jnp.float32) + b4
        ).astype(o_ref.dtype)

    if n_chunks == 1:
        chunk(0)
    else:
        def body(c, carry):
            chunk(pl.multiple_of(c * ch, ch))
            return carry
        lax.fori_loop(0, n_chunks, body, 0, unroll=min(8, n_chunks))


def dummy_model3_forward(x, params, *, tb_cap=32768, chunk=256,
                         transposed_output=False, use_bf16=False):
    """x: (B, input_dim) float32. params: w_i (out, in), b_i (out, 1)."""
    B, input_dim = x.shape
    out_dim = params["w4"].shape[0]

    # Tile selection: big tiles amortize the ~0.35us/step grid overhead, but
    # keep >= ~4 grid steps when B allows so the "parallel" axis can be split
    # across v7x's two TensorCores.  Ragged B -> Pallas edge blocks (no pad).
    tb = max(chunk, min(tb_cap, _round_up(pl.cdiv(B, 4), chunk)))
    grid = (pl.cdiv(B, tb),)
    n_chunks = tb // chunk

    if use_bf16:
        # TODO(synk): bf16 inputs/weights halve x's HBM bytes (biggest win on
        # v5e) but will not pass a 1e-5 allclose against the f32 reference.
        x = x.astype(jnp.bfloat16)
        params = {k: v.astype(jnp.bfloat16) for k, v in params.items()}

    # Weights/biases stay resident in VMEM: full-array blocks, constant index_map.
    def resident(p):
        return pl.BlockSpec(p.shape, lambda i: (0, 0))

    in_specs = [
        # x in native (B, input_dim) layout -> contiguous HBM tile reads.
        pl.BlockSpec((tb, input_dim), lambda i: (i, 0)),
        resident(params["w1"]), resident(params["b1"]),
        resident(params["w2"]), resident(params["b2"]),
        resident(params["w3"]), resident(params["b3"]),
        resident(params["w4"]), resident(params["b4"]),
    ]
    out_spec = pl.BlockSpec((out_dim, tb), lambda i: (0, i))

    h1 = params["w1"].shape[0]
    h2 = params["w2"].shape[0]
    h3 = params["w3"].shape[0]
    flops = 2 * B * (input_dim * h1 + h1 * h2 + h2 * h3 + h3 * out_dim)
    param_bytes = sum(int(v.size) * v.dtype.itemsize for v in params.values())
    bytes_accessed = int(x.size) * x.dtype.itemsize + B * out_dim * 4 + param_bytes

    kernel = functools.partial(mlp_kernel, n_chunks=n_chunks, ch=chunk)

    out_t = pl.pallas_call(
        kernel,
        out_shape=jax.ShapeDtypeStruct((out_dim, B), jnp.float32),
        grid=grid,
        in_specs=in_specs,
        out_specs=out_spec,
        compiler_params=pltpu.CompilerParams(
            dimension_semantics=("parallel",)),
        cost_estimate=pl.CostEstimate(
            flops=int(flops), transcendentals=0,
            bytes_accessed=int(bytes_accessed)),
    )(x,
      params["w1"], params["b1"],
      params["w2"], params["b2"],
      params["w3"], params["b3"],
      params["w4"], params["b4"])

    if transposed_output:
        return out_t                     # (out_dim, B): cheapest for consumers
    return jnp.transpose(out_t)          # (B, out_dim): module-faithful layout


def init_params(key, input_dim=6, output_dim=3, h1=16, h2=16, h3=16):
    """Deterministic init (uniform, PyTorch-default-like scale).

    Weights are stored PyTorch-style (out_features, in_features); biases as
    (out_features, 1) columns for the batch-in-lanes layout.
    """
    dims = [(input_dim, h1), (h1, h2), (h2, h3), (h3, output_dim)]
    params = {}
    keys = jax.random.split(key, 2 * len(dims))
    for i, (fan_in, fan_out) in enumerate(dims):
        bound = 1.0 / (fan_in ** 0.5)
        w = jax.random.uniform(keys[2 * i], (fan_out, fan_in),
                               minval=-bound, maxval=bound, dtype=jnp.float32)
        b = jax.random.uniform(keys[2 * i + 1], (fan_out, 1),
                               minval=-bound, maxval=bound, dtype=jnp.float32)
        params[f"w{i + 1}"] = w
        params[f"b{i + 1}"] = b
    return params


def reference_forward(x, params):
    h = jnp.maximum(x @ params["w1"].T + params["b1"].T, 0.0)
    h = jnp.maximum(h @ params["w2"].T + params["b2"].T, 0.0)
    h = jnp.maximum(h @ params["w3"].T + params["b3"].T, 0.0)
    return h @ params["w4"].T + params["b4"].T


if __name__ == "__main__":
    key = jax.random.PRNGKey(0)
    k_params, k_x1, k_x2 = jax.random.split(key, 3)

    input_dim, output_dim = 6, 3
    params = init_params(k_params, input_dim=input_dim, output_dim=output_dim)

    # Batch a multiple of the tile (exercises a 2-step parallel grid).
    x = jax.random.normal(k_x1, (512, input_dim), dtype=jnp.float32)
    out = jax.block_until_ready(dummy_model3_forward(x, params))
    ref = reference_forward(x, params)
    assert out.shape == (512, output_dim)
    assert jnp.allclose(out, ref, atol=1e-5, rtol=1e-5)

    # Ragged batch (not a multiple of the tile): exercises the edge-block path
    # (no host-side padding; OOB columns are never written back).
    x2 = jax.random.normal(k_x2, (10, input_dim), dtype=jnp.float32)
    out2 = jax.block_until_ready(dummy_model3_forward(x2, params))
    ref2 = reference_forward(x2, params)
    assert out2.shape == (10, output_dim)
    assert jnp.allclose(out2, ref2, atol=1e-5, rtol=1e-5)

    print("KERNEL_OK")
</pallas_src>

<mosaic_0001>
module attributes {stable_mosaic.version = 11 : i64} {
  func.func @mlp_kernel(%arg0: i32, %arg1: memref<256x6xf32, #tpu.memory_space<vmem>>, %arg2: memref<16x6xf32, #tpu.memory_space<vmem>>, %arg3: memref<16x1xf32, #tpu.memory_space<vmem>>, %arg4: memref<16x16xf32, #tpu.memory_space<vmem>>, %arg5: memref<16x1xf32, #tpu.memory_space<vmem>>, %arg6: memref<16x16xf32, #tpu.memory_space<vmem>>, %arg7: memref<16x1xf32, #tpu.memory_space<vmem>>, %arg8: memref<3x16xf32, #tpu.memory_space<vmem>>, %arg9: memref<3x1xf32, #tpu.memory_space<vmem>>, %arg10: memref<3x256xf32, #tpu.memory_space<vmem>>) attributes {dimension_semantics = [#tpu.dimension_semantics<parallel>], iteration_bounds = array<i64: 2>, scalar_prefetch = 0 : i64, scratch_operands = 0 : i64, tpu.core_type = #tpu.core_type<tc>, window_params = [{transform_indices = @transform_0, window_bounds = array<i64: 256, 6>}, {pipeline_mode = #tpu.pipeline_mode<synchronous>, transform_indices = @transform_1, window_bounds = array<i64: 16, 6>}, {pipeline_mode = #tpu.pipeline_mode<synchronous>, transform_indices = @transform_2, window_bounds = array<i64: 16, 1>}, {pipeline_mode = #tpu.pipeline_mode<synchronous>, transform_indices = @transform_3, window_bounds = array<i64: 16, 16>}, {pipeline_mode = #tpu.pipeline_mode<synchronous>, transform_indices = @transform_4, window_bounds = array<i64: 16, 1>}, {pipeline_mode = #tpu.pipeline_mode<synchronous>, transform_indices = @transform_5, window_bounds = array<i64: 16, 16>}, {pipeline_mode = #tpu.pipeline_mode<synchronous>, transform_indices = @transform_6, window_bounds = array<i64: 16, 1>}, {pipeline_mode = #tpu.pipeline_mode<synchronous>, transform_indices = @transform_7, window_bounds = array<i64: 3, 16>}, {pipeline_mode = #tpu.pipeline_mode<synchronous>, transform_indices = @transform_8, window_bounds = array<i64: 3, 1>}, {transform_indices = @transform_9, window_bounds = array<i64: 3, 256>}]} {
    %c0 = arith.constant 0 : index
    %c0_0 = arith.constant 0 : index
    %0 = vector.load %arg2[%c0, %c0_0] : memref<16x6xf32, #tpu.memory_space<vmem>>, vector<16x6xf32>
    %c0_1 = arith.constant 0 : index
    %c0_2 = arith.constant 0 : index
    %1 = vector.load %arg4[%c0_1, %c0_2] : memref<16x16xf32, #tpu.memory_space<vmem>>, vector<16x16xf32>
    %c0_3 = arith.constant 0 : index
    %c0_4 = arith.constant 0 : index
    %2 = vector.load %arg6[%c0_3, %c0_4] : memref<16x16xf32, #tpu.memory_space<vmem>>, vector<16x16xf32>
    %c0_5 = arith.constant 0 : index
    %c0_6 = arith.constant 0 : index
    %3 = vector.load %arg8[%c0_5, %c0_6] : memref<3x16xf32, #tpu.memory_space<vmem>>, vector<3x16xf32>
    %c0_7 = arith.constant 0 : index
    %c0_8 = arith.constant 0 : index
    %4 = vector.load %arg3[%c0_7, %c0_8] : memref<16x1xf32, #tpu.memory_space<vmem>>, vector<16x1xf32>
    %5 = vector.shape_cast %4 : vector<16x1xf32> to vector<16x1xf32>
    %6 = vector.broadcast %5 : vector<16x1xf32> to vector<16x256xf32>
    %c0_9 = arith.constant 0 : index
    %c0_10 = arith.constant 0 : index
    %7 = vector.load %arg5[%c0_9, %c0_10] : memref<16x1xf32, #tpu.memory_space<vmem>>, vector<16x1xf32>
    %8 = vector.shape_cast %7 : vector<16x1xf32> to vector<16x1xf32>
    %9 = vector.broadcast %8 : vector<16x1xf32> to vector<16x256xf32>
    %c0_11 = arith.constant 0 : index
    %c0_12 = arith.constant 0 : index
    %10 = vector.load %arg7[%c0_11, %c0_12] : memref<16x1xf32, #tpu.memory_space<vmem>>, vector<16x1xf32>
    %11 = vector.shape_cast %10 : vector<16x1xf32> to vector<16x1xf32>
    %12 = vector.broadcast %11 : vector<16x1xf32> to vector<16x256xf32>
    %c0_13 = arith.constant 0 : index
    %c0_14 = arith.constant 0 : index
    %13 = vector.load %arg9[%c0_13, %c0_14] : memref<3x1xf32, #tpu.memory_space<vmem>>, vector<3x1xf32>
    %14 = vector.shape_cast %13 : vector<3x1xf32> to vector<3x1xf32>
    %15 = vector.broadcast %14 : vector<3x1xf32> to vector<3x256xf32>
    %c0_15 = arith.constant 0 : index
    %c0_16 = arith.constant 0 : index
    %16 = vector.load %arg1[%c0_15, %c0_16] : memref<256x6xf32, #tpu.memory_space<vmem>>, vector<256x6xf32>
    %cst = arith.constant dense<0.000000e+00> : vector<16x256xf32>
    %17 = tpu.matmul %0, %16, %cst {dimension_numbers = #tpu.dot_dimension_numbers<[1], [1], [0], [0], [0, 0, 1, 0], [], []>} : vector<16x6xf32>, vector<256x6xf32>, vector<16x256xf32> -> vector<16x256xf32>
    %18 = arith.addf %17, %6 : vector<16x256xf32>
    %cst_17 = arith.constant 0.000000e+00 : f32
    %19 = vector.broadcast %cst_17 : f32 to vector<16x256xf32>
    %20 = arith.maximumf %18, %19 : vector<16x256xf32>
    %cst_18 = arith.constant dense<0.000000e+00> : vector<16x256xf32>
    %21 = tpu.matmul %1, %20, %cst_18 {dimension_numbers = #tpu.dot_dimension_numbers<[1], [0], [0], [1], [0, 0, 1, 1], [], []>} : vector<16x16xf32>, vector<16x256xf32>, vector<16x256xf32> -> vector<16x256xf32>
    %22 = arith.addf %21, %9 : vector<16x256xf32>
    %cst_19 = arith.constant 0.000000e+00 : f32
    %23 = vector.broadcast %cst_19 : f32 to vector<16x256xf32>
    %24 = arith.maximumf %22, %23 : vector<16x256xf32>
    %cst_20 = arith.constant dense<0.000000e+00> : vector<16x256xf32>
    %25 = tpu.matmul %2, %24, %cst_20 {dimension_numbers = #tpu.dot_dimension_numbers<[1], [0], [0], [1], [0, 0, 1, 1], [], []>} : vector<16x16xf32>, vector<16x256xf32>, vector<16x256xf32> -> vector<16x256xf32>
    %26 = arith.addf %25, %12 : vector<16x256xf32>
    %cst_21 = arith.constant 0.000000e+00 : f32
    %27 = vector.broadcast %cst_21 : f32 to vector<16x256xf32>
    %28 = arith.maximumf %26, %27 : vector<16x256xf32>
    %cst_22 = arith.constant dense<0.000000e+00> : vector<3x256xf32>
    %29 = tpu.matmul %3, %28, %cst_22 {dimension_numbers = #tpu.dot_dimension_numbers<[1], [0], [0], [1], [0, 0, 1, 1], [], []>} : vector<3x16xf32>, vector<16x256xf32>, vector<3x256xf32> -> vector<3x256xf32>
    %30 = arith.addf %29, %15 : vector<3x256xf32>
    %c0_23 = arith.constant 0 : index
    %c0_24 = arith.constant 0 : index
    %31 = vector.load %arg10[%c0_23, %c0_24] : memref<3x256xf32, #tpu.memory_space<vmem>>, vector<3x256xf32>
    tpu.vector_store %arg10[%c0_23, %c0_24], %30 {strides = array<i32>} : memref<3x256xf32, #tpu.memory_space<vmem>>, vector<3x256xf32>,
    return
  }
  func.func @transform_0(%arg0: i32) -> (i32, i32) {
    %c0_i32 = arith.constant 0 : i32
    %c0_i32_0 = arith.constant 0 : i32
    return %arg0, %c0_i32 : i32, i32
  }
  func.func @transform_1(%arg0: i32) -> (i32, i32) {
    %c0_i32 = arith.constant 0 : i32
    %c0_i32_0 = arith.constant 0 : i32
    %c0_i32_1 = arith.constant 0 : i32
    return %c0_i32, %c0_i32_0 : i32, i32
  }
  func.func @transform_2(%arg0: i32) -> (i32, i32) {
    %c0_i32 = arith.constant 0 : i32
    %c0_i32_0 = arith.constant 0 : i32
    %c0_i32_1 = arith.constant 0 : i32
    return %c0_i32, %c0_i32_0 : i32, i32
  }
  func.func @transform_3(%arg0: i32) -> (i32, i32) {
    %c0_i32 = arith.constant 0 : i32
    %c0_i32_0 = arith.constant 0 : i32
    %c0_i32_1 = arith.constant 0 : i32
    return %c0_i32, %c0_i32_0 : i32, i32
  }
  func.func @transform_4(%arg0: i32) -> (i32, i32) {
    %c0_i32 = arith.constant 0 : i32
    %c0_i32_0 = arith.constant 0 : i32
    %c0_i32_1 = arith.constant 0 : i32
    return %c0_i32, %c0_i32_0 : i32, i32
  }
  func.func @transform_5(%arg0: i32) -> (i32, i32) {
    %c0_i32 = arith.constant 0 : i32
    %c0_i32_0 = arith.constant 0 : i32
    %c0_i32_1 = arith.constant 0 : i32
    return %c0_i32, %c0_i32_0 : i32, i32
  }
  func.func @transform_6(%arg0: i32) -> (i32, i32) {
    %c0_i32 = arith.constant 0 : i32
    %c0_i32_0 = arith.constant 0 : i32
    %c0_i32_1 = arith.constant 0 : i32
    return %c0_i32, %c0_i32_0 : i32, i32
  }
  func.func @transform_7(%arg0: i32) -> (i32, i32) {
    %c0_i32 = arith.constant 0 : i32
    %c0_i32_0 = arith.constant 0 : i32
    %c0_i32_1 = arith.constant 0 : i32
    return %c0_i32, %c0_i32_0 : i32, i32
  }
  func.func @transform_8(%arg0: i32) -> (i32, i32) {
    %c0_i32 = arith.constant 0 : i32
    %c0_i32_0 = arith.constant 0 : i32
    %c0_i32_1 = arith.constant 0 : i32
    return %c0_i32, %c0_i32_0 : i32, i32
  }
  func.func @transform_9(%arg0: i32) -> (i32, i32) {
    %c0_i32 = arith.constant 0 : i32
    %c0_i32_0 = arith.constant 0 : i32
    return %c0_i32, %arg0 : i32, i32
  }
}

</mosaic_0001>

<llo_original>
// kernel: tpu_custom_call.1
$region0: #{tpu_custom_call.1}
  #allocation0 [shape = 'u32[]', space=smem, size = 0x4, offset = 0x4, fixed_abs, tag = 'smem constant byte address 0x4 - core index']
  #allocation1 [shape = 'u32[72,128]{1,0:T(1,128)}', space=vmem, size = 0x9000, scoped, tag = 'internal scratch']
  %s0 = inlined_call_operand.vmem [shape: f32[512,6], index: 0, kind: input, shape index: {}]
  %s1 = inlined_call_operand.vmem [shape: f32[16,6], index: 1, kind: input, shape index: {}]
  %s2 = inlined_call_operand.vmem [shape: f32[16,1], index: 2, kind: input, shape index: {}]
  %s3 = inlined_call_operand.vmem [shape: f32[16,16], index: 3, kind: input, shape index: {}]
  %s4 = inlined_call_operand.vmem [shape: f32[16,1], index: 4, kind: input, shape index: {}]
  %s5 = inlined_call_operand.vmem [shape: f32[16,16], index: 5, kind: input, shape index: {}]
  %s6 = inlined_call_operand.vmem [shape: f32[16,1], index: 6, kind: input, shape index: {}]
  %s7 = inlined_call_operand.vmem [shape: f32[3,16], index: 7, kind: input, shape index: {}]
  %s8 = inlined_call_operand.vmem [shape: f32[3,1], index: 8, kind: input, shape index: {}]
  %s9 = inlined_call_operand.hbm [shape: f32[3,512], index: 9, kind: output, shape index: {}]
  %s10 = sld [smem:[#allocation0]]
  $region69: #{tpu_custom_call.1} parent=0
    _
  %s12 = ssub.s32 1, %s10
  %s13 = scalar_select 0, %s12, %s10
  $region1: #{tpu_custom_call.1} parent=0
    #allocation2 [shape = 'u8[8192]{0}', space=vmem, size = 0x2000, scoped, tag = 'output window, operand 0']
    #allocation3 [shape = 's32[2]{0}', space=sflag, size = 0x8, scoped, tag = 'scoped memory for tpu_custom_call.1']
    %14 = vsyncpa [#allocation3], 0
    %s15 = scalar_lea.sflag [#allocation3], 1
    %16 = vsyncpa %s15, 0
    loop: start=0, step=1, limit=4
    $region2: #{tpu_custom_call.1} parent=1 // loop_pre_header
      _
    $region3: #{tpu_custom_call.1} parent=1 // loop_header
      %s18 = sphi 0, %s22
      %p19 = scmp.ge.s32.totalorder %s18, 4
      %s28 = sphi 0, %s30
      %s31 = sphi 0, %s28
      %s32 = sphi 0, %s31
      %s48 = sphi 0, %s32
      %s52 = sphi 0, %s52
      %s54 = sphi 0, %s52
      %s55 = sphi 0, %s54
      %s69 = sphi 0, %s55
      %s73 = sphi 0, %s73
      %s75 = sphi 0, %s73
      %s76 = sphi 0, %s75
      %s90 = sphi 0, %s76
      %s94 = sphi 0, %s94
      %s96 = sphi 0, %s94
      %s97 = sphi 0, %s96
      %s111 = sphi 0, %s97
      %s115 = sphi 0, %s115
      %s117 = sphi 0, %s115
      %s118 = sphi 0, %s117
      %s132 = sphi 0, %s118
      %s136 = sphi 0, %s136
      %s138 = sphi 0, %s136
      %s139 = sphi 0, %s138
      %s153 = sphi 0, %s139
      %s157 = sphi 0, %s157
      %s159 = sphi 0, %s157
      %s160 = sphi 0, %s159
      %s174 = sphi 0, %s160
      %s178 = sphi 0, %s178
      %s180 = sphi 0, %s178
      %s181 = sphi 0, %s180
      %s195 = sphi 0, %s181
      %s199 = sphi 0, %s199
      %s201 = sphi 0, %s199
      %s202 = sphi 0, %s201
      %s216 = sphi 0, %s202
      %s222 = sphi 0, %s224
      %s225 = sphi 0, %s222
      %s226 = sphi 0, %s225
      %s242 = sphi 0, %s226
    $region4: #{tpu_custom_call.1} parent=1 // loop_header_branch
      %21 = sbr.rel (%p19) target = $region8
    $region5: #{tpu_custom_call.1} parent=1 // loop_body
      %s23 = ssub.s32 %s18, 1
      %s24 = ssub.s32 %s18, 2
      %s25 = sadd.s32 %s18, 1
      %s26 = ssub.s32 %s18, %s25
      %p27 = scmp.eq.s32.totalorder %s26, 0
      %s29 = sadd.s32 %s28, 1
      %s30 = scalar_select %p27, %s28, %s29
      %p33 = pneg %p27
      %p34 = scmp.eq.s32.totalorder %s18, 1
      %p35 = por %p33, %p34
      %p36 = scmp.ne.s32.totalorder %s28, %s31
      %p37 = scmp.eq.s32.totalorder %s18, 0
      %p38 = por %p36, %p37
      %p39 = scmp.ne.s32.totalorder %s28, %s31
      %p40 = scmp.eq.s32.totalorder %s23, 1
      %p41 = por %p39, %p40
      %p42 = scmp.ne.s32.totalorder %s31, %s32
      %p43 = scmp.eq.s32.totalorder %s23, 0
      %p44 = por %p42, %p43
      %p45 = scmp.ne.s32.totalorder %s31, %s32
      %p46 = scmp.eq.s32.totalorder %s24, 1
      %p47 = por %p45, %p46
      %p49 = scmp.ne.s32.totalorder %s32, %s48
      %p50 = scmp.eq.s32.totalorder %s24, 0
      %p51 = por %p49, %p50
      %s53 = sadd.s32 %s52, 1
      %p56 = scmp.eq.s32.totalorder %s18, 1
      %p57 = scmp.ne.s32.totalorder %s52, %s54
      %p58 = scmp.eq.s32.totalorder %s18, 0
      %p59 = por %p57, %p58
      %p60 = scmp.ne.s32.totalorder %s52, %s54
      %p61 = scmp.eq.s32.totalorder %s23, 1
      %p62 = por %p60, %p61
      %p63 = scmp.ne.s32.totalorder %s54, %s55
      %p64 = scmp.eq.s32.totalorder %s23, 0
      %p65 = por %p63, %p64
      %p66 = scmp.ne.s32.totalorder %s54, %s55
      %p67 = scmp.eq.s32.totalorder %s24, 1
      %p68 = por %p66, %p67
      %p70 = scmp.ne.s32.totalorder %s55, %s69
      %p71 = scmp.eq.s32.totalorder %s24, 0
      %p72 = por %p70, %p71
      %s74 = sadd.s32 %s73, 1
      %p77 = scmp.eq.s32.totalorder %s18, 1
      %p78 = scmp.ne.s32.totalorder %s73, %s75
      %p79 = scmp.eq.s32.totalorder %s18, 0
      %p80 = por %p78, %p79
      %p81 = scmp.ne.s32.totalorder %s73, %s75
      %p82 = scmp.eq.s32.totalorder %s23, 1
      %p83 = por %p81, %p82
      %p84 = scmp.ne.s32.totalorder %s75, %s76
      %p85 = scmp.eq.s32.totalorder %s23, 0
      %p86 = por %p84, %p85
      %p87 = scmp.ne.s32.totalorder %s75, %s76
      %p88 = scmp.eq.s32.totalorder %s24, 1
      %p89 = por %p87, %p88
      %p91 = scmp.ne.s32.totalorder %s76, %s90
      %p92 = scmp.eq.s32.totalorder %s24, 0
      %p93 = por %p91, %p92
      %s95 = sadd.s32 %s94, 1
      %p98 = scmp.eq.s32.totalorder %s18, 1
      %p99 = scmp.ne.s32.totalorder %s94, %s96
      %p100 = scmp.eq.s32.totalorder %s18, 0
      %p101 = por %p99, %p100
      %p102 = scmp.ne.s32.totalorder %s94, %s96
      %p103 = scmp.eq.s32.totalorder %s23, 1
      %p104 = por %p102, %p103
      %p105 = scmp.ne.s32.totalorder %s96, %s97
      %p106 = scmp.eq.s32.totalorder %s23, 0
      %p107 = por %p105, %p106
      %p108 = scmp.ne.s32.totalorder %s96, %s97
      %p109 = scmp.eq.s32.totalorder %s24, 1
      %p110 = por %p108, %p109
      %p112 = scmp.ne.s32.totalorder %s97, %s111
      %p113 = scmp.eq.s32.totalorder %s24, 0
      %p114 = por %p112, %p113
      %s116 = sadd.s32 %s115, 1
      %p119 = scmp.eq.s32.totalorder %s18, 1
      %p120 = scmp.ne.s32.totalorder %s115, %s117
      %p121 = scmp.eq.s32.totalorder %s18, 0
      %p122 = por %p120, %p121
      %p123 = scmp.ne.s32.totalorder %s115, %s117
      %p124 = scmp.eq.s32.totalorder %s23, 1
      %p125 = por %p123, %p124
      %p126 = scmp.ne.s32.totalorder %s117, %s118
      %p127 = scmp.eq.s32.totalorder %s23, 0
      %p128 = por %p126, %p127
      %p129 = scmp.ne.s32.totalorder %s117, %s118
      %p130 = scmp.eq.s32.totalorder %s24, 1
      %p131 = por %p129, %p130
      %p133 = scmp.ne.s32.totalorder %s118, %s132
      %p134 = scmp.eq.s32.totalorder %s24, 0
      %p135 = por %p133, %p134
      %s137 = sadd.s32 %s136, 1
      %p140 = scmp.eq.s32.totalorder %s18, 1
      %p141 = scmp.ne.s32.totalorder %s136, %s138
      %p142 = scmp.eq.s32.totalorder %s18, 0
      %p143 = por %p141, %p142
      %p144 = scmp.ne.s32.totalorder %s136, %s138
      %p145 = scmp.eq.s32.totalorder %s23, 1
      %p146 = por %p144, %p145
      %p147 = scmp.ne.s32.totalorder %s138, %s139
      %p148 = scmp.eq.s32.totalorder %s23, 0
      %p149 = por %p147, %p148
      %p150 = scmp.ne.s32.totalorder %s138, %s139
      %p151 = scmp.eq.s32.totalorder %s24, 1
      %p152 = por %p150, %p151
      %p154 = scmp.ne.s32.totalorder %s139, %s153
      %p155 = scmp.eq.s32.totalorder %s24, 0
      %p156 = por %p154, %p155
      %s158 = sadd.s32 %s157, 1
      %p161 = scmp.eq.s32.totalorder %s18, 1
      %p162 = scmp.ne.s32.totalorder %s157, %s159
      %p163 = scmp.eq.s32.totalorder %s18, 0
      %p164 = por %p162, %p163
      %p165 = scmp.ne.s32.totalorder %s157, %s159
      %p166 = scmp.eq.s32.totalorder %s23, 1
      %p167 = por %p165, %p166
      %p168 = scmp.ne.s32.totalorder %s159, %s160
      %p169 = scmp.eq.s32.totalorder %s23, 0
      %p170 = por %p168, %p169
      %p171 = scmp.ne.s32.totalorder %s159, %s160
      %p172 = scmp.eq.s32.totalorder %s24, 1
      %p173 = por %p171, %p172
      %p175 = scmp.ne.s32.totalorder %s160, %s174
      %p176 = scmp.eq.s32.totalorder %s24, 0
      %p177 = por %p175, %p176
      %s179 = sadd.s32 %s178, 1
      %p182 = scmp.eq.s32.totalorder %s18, 1
      %p183 = scmp.ne.s32.totalorder %s178, %s180
      %p184 = scmp.eq.s32.totalorder %s18, 0
      %p185 = por %p183, %p184
      %p186 = scmp.ne.s32.totalorder %s178, %s180
      %p187 = scmp.eq.s32.totalorder %s23, 1
      %p188 = por %p186, %p187
      %p189 = scmp.ne.s32.totalorder %s180, %s181
      %p190 = scmp.eq.s32.totalorder %s23, 0
      %p191 = por %p189, %p190
      %p192 = scmp.ne.s32.totalorder %s180, %s181
      %p193 = scmp.eq.s32.totalorder %s24, 1
      %p194 = por %p192, %p193
      %p196 = scmp.ne.s32.totalorder %s181, %s195
      %p197 = scmp.eq.s32.totalorder %s24, 0
      %p198 = por %p196, %p197
      %s200 = sadd.s32 %s199, 1
      %p203 = scmp.eq.s32.totalorder %s18, 1
      %p204 = scmp.ne.s32.totalorder %s199, %s201
      %p205 = scmp.eq.s32.totalorder %s18, 0
      %p206 = por %p204, %p205
      %p207 = scmp.ne.s32.totalorder %s199, %s201
      %p208 = scmp.eq.s32.totalorder %s23, 1
      %p209 = por %p207, %p208
      %p210 = scmp.ne.s32.totalorder %s201, %s202
      %p211 = scmp.eq.s32.totalorder %s23, 0
      %p212 = por %p210, %p211
      %p213 = scmp.ne.s32.totalorder %s201, %s202
      %p214 = scmp.eq.s32.totalorder %s24, 1
      %p215 = por %p213, %p214
      %p217 = scmp.ne.s32.totalorder %s202, %s216
      %p218 = scmp.eq.s32.totalorder %s24, 0
      %p219 = por %p217, %p218
      %s220 = ssub.s32 %s18, %s25
      %p221 = scmp.eq.s32.totalorder %s220, 0
      %s223 = sadd.s32 %s222, 1
      %s224 = scalar_select %p221, %s222, %s223
      %p227 = pneg %p221
      %p228 = scmp.eq.s32.totalorder %s18, 1
      %p229 = por %p227, %p228
      %p230 = scmp.ne.s32.totalorder %s222, %s225
      %p231 = scmp.eq.s32.totalorder %s18, 0
      %p232 = por %p230, %p231
      %p233 = scmp.ne.s32.totalorder %s222, %s225
      %p234 = scmp.eq.s32.totalorder %s23, 1
      %p235 = por %p233, %p234
      %p236 = scmp.ne.s32.totalorder %s225, %s226
      %p237 = scmp.eq.s32.totalorder %s23, 0
      %p238 = por %p236, %p237
      %p239 = scmp.ne.s32.totalorder %s225, %s226
      %p240 = scmp.eq.s32.totalorder %s24, 1
      %p241 = por %p239, %p240
      %p243 = scmp.ne.s32.totalorder %s226, %s242
      %p244 = scmp.eq.s32.totalorder %s24, 0
      %p245 = por %p243, %p244
      %p246 = scmp.le.s32.totalorder 1, %s18
      %p247 = scmp.lt.s32.totalorder %s18, 3
      %p248 = pnand %p246, %p247
      %p249 = pneg %p248
      // Predicated region
      $region9: #{tpu_custom_call.1} parent=5 // pred_check
        _
      $region10: #{tpu_custom_call.1} parent=5 // pred_check_branch
        %251 = sbr.rel (%p248) target = $region12
      $region11: #{tpu_custom_call.1} parent=5 // pred_region
        %s252 = ssub.s32 %s18, 1
        // Predicated region
        $region13: #{tpu_custom_call.1} parent=11 // pred_check
          %p253 = pneg %p65
        $region14: #{tpu_custom_call.1} parent=11 // pred_check_branch
          %255 = sbr.rel (%p253) target = $region16
        $region15: #{tpu_custom_call.1} parent=11 // pred_region
          _
        $region16: #{tpu_custom_call.1} parent=11 // pred_fallthru
          _
        // Predicated region
        $region17: #{tpu_custom_call.1} parent=11 // pred_check
          %p256 = pneg %p86
        $region18: #{tpu_custom_call.1} parent=11 // pred_check_branch
          %258 = sbr.rel (%p256) target = $region20
        $region19: #{tpu_custom_call.1} parent=11 // pred_region
          _
        $region20: #{tpu_custom_call.1} parent=11 // pred_fallthru
          _
        // Predicated region
        $region21: #{tpu_custom_call.1} parent=11 // pred_check
          %p259 = pneg %p107
        $region22: #{tpu_custom_call.1} parent=11 // pred_check_branch
          %261 = sbr.rel (%p259) target = $region24
        $region23: #{tpu_custom_call.1} parent=11 // pred_region
          _
        $region24: #{tpu_custom_call.1} parent=11 // pred_fallthru
          _
        // Predicated region
        $region25: #{tpu_custom_call.1} parent=11 // pred_check
          %p262 = pneg %p128
        $region26: #{tpu_custom_call.1} parent=11 // pred_check_branch
          %264 = sbr.rel (%p262) target = $region28
        $region27: #{tpu_custom_call.1} parent=11 // pred_region
          _
        $region28: #{tpu_custom_call.1} parent=11 // pred_fallthru
          _
        // Predicated region
        $region29: #{tpu_custom_call.1} parent=11 // pred_check
          %p265 = pneg %p149
        $region30: #{tpu_custom_call.1} parent=11 // pred_check_branch
          %267 = sbr.rel (%p265) target = $region32
        $region31: #{tpu_custom_call.1} parent=11 // pred_region
          _
        $region32: #{tpu_custom_call.1} parent=11 // pred_fallthru
          _
        // Predicated region
        $region33: #{tpu_custom_call.1} parent=11 // pred_check
          %p268 = pneg %p170
        $region34: #{tpu_custom_call.1} parent=11 // pred_check_branch
          %270 = sbr.rel (%p268) target = $region36
        $region35: #{tpu_custom_call.1} parent=11 // pred_region
          _
        $region36: #{tpu_custom_call.1} parent=11 // pred_fallthru
          _
        // Predicated region
        $region37: #{tpu_custom_call.1} parent=11 // pred_check
          %p271 = pneg %p191
        $region38: #{tpu_custom_call.1} parent=11 // pred_check_branch
          %273 = sbr.rel (%p271) target = $region40
        $region39: #{tpu_custom_call.1} parent=11 // pred_region
          _
        $region40: #{tpu_custom_call.1} parent=11 // pred_fallthru
          _
        // Predicated region
        $region41: #{tpu_custom_call.1} parent=11 // pred_check
          %p274 = pneg %p212
        $region42: #{tpu_custom_call.1} parent=11 // pred_check_branch
          %276 = sbr.rel (%p274) target = $region44
        $region43: #{tpu_custom_call.1} parent=11 // pred_region
          _
        $region44: #{tpu_custom_call.1} parent=11 // pred_fallthru
          _
      $region12: #{tpu_custom_call.1} parent=5 // pred_fallthru
        _
      %p277 = scmp.lt.s32.totalorder %s18, 2
      // Predicated region
      $region45: #{tpu_custom_call.1} parent=5 // pred_check
        %p278 = pneg %p277
      $region46: #{tpu_custom_call.1} parent=5 // pred_check_branch
        %280 = sbr.rel (%p278) target = $region48
      $region47: #{tpu_custom_call.1} parent=5 // pred_region
        // Predicated region
        $region49: #{tpu_custom_call.1} parent=47 // pred_check
          %p281 = pneg %p38
        $region50: #{tpu_custom_call.1} parent=47 // pred_check_branch
          %283 = sbr.rel (%p281) target = $region52
        $region51: #{tpu_custom_call.1} parent=47 // pred_region
          %s284 = smul.u32 32, %s18
          %p285 = scmp.lt.s32.totalorder %s284, 63
          %s286 = scalar_select %p285, %s284, 63
          %s287 = smul.addr %s286, 8
          %s288 = scalar_lea.vmem %s0, %s287
          %s289 = smul.u32 32, %s18
        $region52: #{tpu_custom_call.1} parent=47 // pred_fallthru
          _
      $region48: #{tpu_custom_call.1} parent=5 // pred_fallthru
        _
      %p290 = scmp.le.s32.totalorder 1, %s18
      %p291 = scmp.lt.s32.totalorder %s18, 3
      %p292 = pnand %p290, %p291
      %p293 = pneg %p292
      // Predicated region
      $region53: #{tpu_custom_call.1} parent=5 // pred_check
        _
      $region54: #{tpu_custom_call.1} parent=5 // pred_check_branch
        %295 = sbr.rel (%p292) target = $region56
      $region55: #{tpu_custom_call.1} parent=5 // pred_region
        %s296 = ssub.s32 %s18, 1
        %s297 = smul.u32 32, %s23
        %p298 = scmp.lt.s32.totalorder %s297, 63
        %s299 = scalar_select %p298, %s297, 63
        %s300 = smul.addr %s299, 8
        %s301 = scalar_lea.vmem %s0, %s300
        %p302 = pneg %p44
        %p303 = pneg %p41
        %p304 = pneg %p65
        %p305 = pneg %p62
        %p306 = pneg %p86
        %p307 = pneg %p83
        %p308 = pneg %p107
        %p309 = pneg %p104
        %p310 = pneg %p128
        %p311 = pneg %p125
        %p312 = pneg %p149
        %p313 = pneg %p146
        %p314 = pneg %p170
        %p315 = pneg %p167
        %p316 = pneg %p191
        %p317 = pneg %p188
        %p318 = pneg %p212
        %p319 = pneg %p209
        %p320 = pneg %p238
        %p321 = pneg %p235
        %s322 = sand.u32 %s225, 1
        %s323 = scalar_lea.sflag [#allocation3], %s322
        %s324 = sand.u32 %s225, 1
        %s325 = smul.addr %s324, 8
        %s326 = scalar_lea.vmem [#allocation2], %s325
        %s327 = smul.u32 32, %s23
        %p328 = scmp.lt.s32.totalorder %s327, 63
        %s329 = scalar_select %p328, %s327, 63
        %s330 = smul.addr %s329, 8
        %s331 = scalar_lea.vmem %s0, %s330
        %s332 = smul.u32 32, %s23
        %s333 = smul.u32 2, %s23
        %v334 = vld [vmem:[%s1] sm:$0xff]
        %v335 = vld [vmem:[%s1 + $0x8] sm:$0xff]
        %v336 = vld [vmem:[%s3] sm:$0xff]
        %v337 = vld [vmem:[%s3 + $0x8] sm:$0xff]
        %v338 = vld [vmem:[%s5] sm:$0xff]
        %v339 = vld [vmem:[%s5 + $0x8] sm:$0xff]
        %v340 = vld [vmem:[%s7] sm:$0x7]
        %v341 = vld [vmem:[%s2] sm:$0xff]
        %v342 = vld [vmem:[%s2 + $0x8] sm:$0xff]
        %344 = vset.pattern.permute.xlu0 0
        %345 = vperm.xlu0 %344, %v341
        %v346 = vpop.permute.xlu0 %345
        %349 = vset.pattern.permute.xlu0 0
        %350 = vperm.xlu0 %349, %v342
        %v351 = vpop.permute.xlu0 %350
        %v353 = vld [vmem:[%s4] sm:$0xff]
        %v354 = vld [vmem:[%s4 + $0x8] sm:$0xff]
        %356 = vset.pattern.permute.xlu0 0
        %357 = vperm.xlu0 %356, %v353
        %v358 = vpop.permute.xlu0 %357
        %361 = vset.pattern.permute.xlu0 0
        %362 = vperm.xlu0 %361, %v354
        %v363 = vpop.permute.xlu0 %362
        %v365 = vld [vmem:[%s6] sm:$0xff]
        %v366 = vld [vmem:[%s6 + $0x8] sm:$0xff]
        %368 = vset.pattern.permute.xlu0 0
        %369 = vperm.xlu0 %368, %v365
        %v370 = vpop.permute.xlu0 %369
        %373 = vset.pattern.permute.xlu0 0
        %374 = vperm.xlu0 %373, %v366
        %v375 = vpop.permute.xlu0 %374
        %v377 = vld [vmem:[%s8] sm:$0x7]
        %379 = vset.pattern.permute.xlu0 0
        %380 = vperm.xlu0 %379, %v377
        %v381 = vpop.permute.xlu0 %380
        %v383 = vld [vmem:[%s331] sm:$0xff]
        %v384 = vld [vmem:[%s331 + $0x8] sm:$0xff]
        %v385 = vld [vmem:[%s331 + $0x10] sm:$0xff]
        %v386 = vld [vmem:[%s331 + $0x18] sm:$0xff]
        %v387 = vld [vmem:[%s331 + $0x20] sm:$0xff]
        %v388 = vld [vmem:[%s331 + $0x28] sm:$0xff]
        %v389 = vld [vmem:[%s331 + $0x30] sm:$0xff]
        %v390 = vld [vmem:[%s331 + $0x38] sm:$0xff]
        %v391 = vld [vmem:[%s331 + $0x40] sm:$0xff]
        %v392 = vld [vmem:[%s331 + $0x48] sm:$0xff]
        %v393 = vld [vmem:[%s331 + $0x50] sm:$0xff]
        %v394 = vld [vmem:[%s331 + $0x58] sm:$0xff]
        %v395 = vld [vmem:[%s331 + $0x60] sm:$0xff]
        %v396 = vld [vmem:[%s331 + $0x68] sm:$0xff]
        %v397 = vld [vmem:[%s331 + $0x70] sm:$0xff]
        %v398 = vld [vmem:[%s331 + $0x78] sm:$0xff]
        %v399 = vld [vmem:[%s331 + $0x80] sm:$0xff]
        %v400 = vld [vmem:[%s331 + $0x88] sm:$0xff]
        %v401 = vld [vmem:[%s331 + $0x90] sm:$0xff]
        %v402 = vld [vmem:[%s331 + $0x98] sm:$0xff]
        %v403 = vld [vmem:[%s331 + $0xa0] sm:$0xff]
        %v404 = vld [vmem:[%s331 + $0xa8] sm:$0xff]
        %v405 = vld [vmem:[%s331 + $0xb0] sm:$0xff]
        %v406 = vld [vmem:[%s331 + $0xb8] sm:$0xff]
        %v407 = vld [vmem:[%s331 + $0xc0] sm:$0xff]
        %v408 = vld [vmem:[%s331 + $0xc8] sm:$0xff]
        %v409 = vld [vmem:[%s331 + $0xd0] sm:$0xff]
        %v410 = vld [vmem:[%s331 + $0xd8] sm:$0xff]
        %v411 = vld [vmem:[%s331 + $0xe0] sm:$0xff]
        %v412 = vld [vmem:[%s331 + $0xe8] sm:$0xff]
        %v413 = vld [vmem:[%s331 + $0xf0] sm:$0xff]
        %v414 = vld [vmem:[%s331 + $0xf8] sm:$0xff]
        %vm415 = vcmask 48128
        %v417 = vsel %vm415, %v334, 0
        %v420 = vsel %vm415, %v335, 0
        %v423 = vsel %vm415, %v383, 0
        %v426 = vsel %vm415, %v384, 0
        %v429 = vsel %vm415, %v385, 0
        %v432 = vsel %vm415, %v386, 0
        %v435 = vsel %vm415, %v387, 0
        %v438 = vsel %vm415, %v388, 0
        %v441 = vsel %vm415, %v389, 0
        %v444 = vsel %vm415, %v390, 0
        %v447 = vsel %vm415, %v391, 0
        %v450 = vsel %vm415, %v392, 0
        %v453 = vsel %vm415, %v393, 0
        %v456 = vsel %vm415, %v394, 0
        %v459 = vsel %vm415, %v395, 0
        %v462 = vsel %vm415, %v396, 0
        %v465 = vsel %vm415, %v397, 0
        %v468 = vsel %vm415, %v398, 0
        %v471 = vsel %vm415, %v399, 0
        %v474 = vsel %vm415, %v400, 0
        %v477 = vsel %vm415, %v401, 0
        %v480 = vsel %vm415, %v402, 0
        %v483 = vsel %vm415, %v403, 0
        %v486 = vsel %vm415, %v404, 0
        %v489 = vsel %vm415, %v405, 0
        %v492 = vsel %vm415, %v406, 0
        %v495 = vsel %vm415, %v407, 0
        %v498 = vsel %vm415, %v408, 0
        %v501 = vsel %vm415, %v409, 0
        %v504 = vsel %vm415, %v410, 0
        %v507 = vsel %vm415, %v411, 0
        %v510 = vsel %vm415, %v412, 0
        %v513 = vsel %vm415, %v413, 0
        %v516 = vsel %vm415, %v414, 0
        %518 = vmatpush.xpose.msra.mxu0 %v468
        %519 = vmatpush.xpose.msra.mxu0 %v465
        %520 = vmatpush.xpose.msra.mxu0 %v462
        %521 = vmatpush.xpose.msra.mxu0 %v459
        %522 = vmatpush.xpose.msra.mxu0 %v456
        %523 = vmatpush.xpose.msra.mxu0 %v453
        %524 = vmatpush.xpose.msra.mxu0 %v450
        %525 = vmatpush.xpose.msra.mxu0 %v447
        %526 = vmatpush.xpose.msra.mxu0 %v444
        %527 = vmatpush.xpose.msra.mxu0 %v441
        %528 = vmatpush.xpose.msra.mxu0 %v438
        %529 = vmatpush.xpose.msra.mxu0 %v435
        %530 = vmatpush.xpose.msra.mxu0 %v432
        %531 = vmatpush.xpose.msra.mxu0 %v429
        %532 = vmatpush.xpose.msra.mxu0 %v426
        %533 = vmatpush.xpose.msra.mxu0 %v423
        %534 = vmatmul.f32.gmra.mxu0 %v417
        %v535 = vpop.f32.mrf.mxu0
        %v536 = vadd.f32 %v346, %v535
        %537 = vmatmul.f32.gmra.mxu0 %v420
        %v538 = vpop.f32.mrf.mxu0
        %v539 = vadd.f32 %v351, %v538
        %540 = vdwg.mxu0
        %541 = vmatpush.xpose.msra.mxu0 %v516
        %542 = vmatpush.xpose.msra.mxu0 %v513
        %543 = vmatpush.xpose.msra.mxu0 %v510
        %544 = vmatpush.xpose.msra.mxu0 %v507
        %545 = vmatpush.xpose.msra.mxu0 %v504
        %546 = vmatpush.xpose.msra.mxu0 %v501
        %547 = vmatpush.xpose.msra.mxu0 %v498
        %548 = vmatpush.xpose.msra.mxu0 %v495
        %549 = vmatpush.xpose.msra.mxu0 %v492
        %550 = vmatpush.xpose.msra.mxu0 %v489
        %551 = vmatpush.xpose.msra.mxu0 %v486
        %552 = vmatpush.xpose.msra.mxu0 %v483
        %553 = vmatpush.xpose.msra.mxu0 %v480
        %554 = vmatpush.xpose.msra.mxu0 %v477
        %555 = vmatpush.xpose.msra.mxu0 %v474
        %556 = vmatpush.xpose.msra.mxu0 %v471
        %557 = vmatmul.f32.gmra.mxu0 %v417
        %v558 = vpop.f32.mrf.mxu0
        %v559 = vadd.f32 %v346, %v558
        %560 = vmatmul.f32.gmra.mxu0 %v420
        %v561 = vpop.f32.mrf.mxu0
        %v562 = vadd.f32 %v351, %v561
        %563 = vdwg.mxu0
        %v564 = vmax.f32 %v536, 0.0
        %v565 = vmax.f32 %v559, 0.0
        %v566 = vmax.f32 %v539, 0.0
        %v567 = vmax.f32 %v562, 0.0
        %vm568 = vcmask 130048
        %v570 = vsel %vm568, %v336, 0
        %v573 = vsel %vm568, %v337, 0
        %575 = vmatpush.msra.mxu0 0.0
        %576 = vmatpush.msra.mxu0 0.0
        %577 = vmatpush.msra.mxu0 0.0
        %578 = vmatpush.msra.mxu0 0.0
        %579 = vmatpush.msra.mxu0 0.0
        %580 = vmatpush.msra.mxu0 0.0
        %581 = vmatpush.msra.mxu0 0.0
        %582 = vmatpush.msra.mxu0 0.0
        %583 = vmatpush.msra.mxu0 0.0
        %584 = vmatpush.msra.mxu0 0.0
        %585 = vmatpush.msra.mxu0 0.0
        %586 = vmatpush.msra.mxu0 0.0
        %587 = vmatpush.msra.mxu0 0.0
        %588 = vmatpush.msra.mxu0 0.0
        %589 = vmatpush.msra.mxu0 %v566
        %590 = vmatpush.msra.mxu0 %v564
        %591 = vmatmul.f32.gmra.mxu0 %v570
        %v592 = vpop.f32.mrf.mxu0
        %v593 = vadd.f32 %v358, %v592
        %594 = vmatmul.f32.gmra.mxu0 %v573
        %v595 = vpop.f32.mrf.mxu0
        %v596 = vadd.f32 %v363, %v595
        %597 = vdwg.mxu0
        %598 = vmatpush.msra.mxu0 0.0
        %599 = vmatpush.msra.mxu0 0.0
        %600 = vmatpush.msra.mxu0 0.0
        %601 = vmatpush.msra.mxu0 0.0
        %602 = vmatpush.msra.mxu0 0.0
        %603 = vmatpush.msra.mxu0 0.0
        %604 = vmatpush.msra.mxu0 0.0
        %605 = vmatpush.msra.mxu0 0.0
        %606 = vmatpush.msra.mxu0 0.0
        %607 = vmatpush.msra.mxu0 0.0
        %608 = vmatpush.msra.mxu0 0.0
        %609 = vmatpush.msra.mxu0 0.0
        %610 = vmatpush.msra.mxu0 0.0
        %611 = vmatpush.msra.mxu0 0.0
        %612 = vmatpush.msra.mxu0 %v567
        %613 = vmatpush.msra.mxu0 %v565
        %614 = vmatmul.f32.gmra.mxu0 %v570
        %v615 = vpop.f32.mrf.mxu0
        %v616 = vadd.f32 %v358, %v615
        %617 = vmatmul.f32.gmra.mxu0 %v573
        %v618 = vpop.f32.mrf.mxu0
        %v619 = vadd.f32 %v363, %v618
        %620 = vdwg.mxu0
        %v621 = vmax.f32 %v593, 0.0
        %v622 = vmax.f32 %v616, 0.0
        %v623 = vmax.f32 %v596, 0.0
        %v624 = vmax.f32 %v619, 0.0
        %v626 = vsel %vm568, %v338, 0
        %v629 = vsel %vm568, %v339, 0
        %631 = vmatpush.msra.mxu0 0.0
        %632 = vmatpush.msra.mxu0 0.0
        %633 = vmatpush.msra.mxu0 0.0
        %634 = vmatpush.msra.mxu0 0.0
        %635 = vmatpush.msra.mxu0 0.0
        %636 = vmatpush.msra.mxu0 0.0
        %637 = vmatpush.msra.mxu0 0.0
        %638 = vmatpush.msra.mxu0 0.0
        %639 = vmatpush.msra.mxu0 0.0
        %640 = vmatpush.msra.mxu0 0.0
        %641 = vmatpush.msra.mxu0 0.0
        %642 = vmatpush.msra.mxu0 0.0
        %643 = vmatpush.msra.mxu0 0.0
        %644 = vmatpush.msra.mxu0 0.0
        %645 = vmatpush.msra.mxu0 %v623
        %646 = vmatpush.msra.mxu0 %v621
        %647 = vmatmul.f32.gmra.mxu0 %v626
        %v648 = vpop.f32.mrf.mxu0
        %v649 = vadd.f32 %v370, %v648
        %650 = vmatmul.f32.gmra.mxu0 %v629
        %v651 = vpop.f32.mrf.mxu0
        %v652 = vadd.f32 %v375, %v651
        %653 = vdwg.mxu0
        %654 = vmatpush.msra.mxu0 0.0
        %655 = vmatpush.msra.mxu0 0.0
        %656 = vmatpush.msra.mxu0 0.0
        %657 = vmatpush.msra.mxu0 0.0
        %658 = vmatpush.msra.mxu0 0.0
        %659 = vmatpush.msra.mxu0 0.0
        %660 = vmatpush.msra.mxu0 0.0
        %661 = vmatpush.msra.mxu0 0.0
        %662 = vmatpush.msra.mxu0 0.0
        %663 = vmatpush.msra.mxu0 0.0
        %664 = vmatpush.msra.mxu0 0.0
        %665 = vmatpush.msra.mxu0 0.0
        %666 = vmatpush.msra.mxu0 0.0
        %667 = vmatpush.msra.mxu0 0.0
        %668 = vmatpush.msra.mxu0 %v624
        %669 = vmatpush.msra.mxu0 %v622
        %670 = vmatmul.f32.gmra.mxu0 %v626
        %v671 = vpop.f32.mrf.mxu0
        %v672 = vadd.f32 %v370, %v671
        %673 = vmatmul.f32.gmra.mxu0 %v629
        %v674 = vpop.f32.mrf.mxu0
        %v675 = vadd.f32 %v375, %v674
        %676 = vdwg.mxu0
        %v677 = vmax.f32 %v649, 0.0
        %v678 = vmax.f32 %v672, 0.0
        %v679 = vmax.f32 %v652, 0.0
        %v680 = vmax.f32 %v675, 0.0
        %v682 = vsel %vm568, %v340, 0
        %684 = vmatpush.msra.mxu0 0.0
        %685 = vmatpush.msra.mxu0 0.0
        %686 = vmatpush.msra.mxu0 0.0
        %687 = vmatpush.msra.mxu0 0.0
        %688 = vmatpush.msra.mxu0 0.0
        %689 = vmatpush.msra.mxu0 0.0
        %690 = vmatpush.msra.mxu0 0.0
        %691 = vmatpush.msra.mxu0 0.0
        %692 = vmatpush.msra.mxu0 0.0
        %693 = vmatpush.msra.mxu0 0.0
        %694 = vmatpush.msra.mxu0 0.0
        %695 = vmatpush.msra.mxu0 0.0
        %696 = vmatpush.msra.mxu0 0.0
        %697 = vmatpush.msra.mxu0 0.0
        %698 = vmatpush.msra.mxu0 %v679
        %699 = vmatpush.msra.mxu0 %v677
        %700 = vmatmul.f32.gmra.mxu0 %v682
        %v701 = vpop.f32.mrf.mxu0
        %v702 = vadd.f32 %v381, %v701
        %703 = vdwg.mxu0
        %704 = vmatpush.msra.mxu0 0.0
        %705 = vmatpush.msra.mxu0 0.0
        %706 = vmatpush.msra.mxu0 0.0
        %707 = vmatpush.msra.mxu0 0.0
        %708 = vmatpush.msra.mxu0 0.0
        %709 = vmatpush.msra.mxu0 0.0
        %710 = vmatpush.msra.mxu0 0.0
        %711 = vmatpush.msra.mxu0 0.0
        %712 = vmatpush.msra.mxu0 0.0
        %713 = vmatpush.msra.mxu0 0.0
        %714 = vmatpush.msra.mxu0 0.0
        %715 = vmatpush.msra.mxu0 0.0
        %716 = vmatpush.msra.mxu0 0.0
        %717 = vmatpush.msra.mxu0 0.0
        %718 = vmatpush.msra.mxu0 %v680
        %719 = vmatpush.msra.mxu0 %v678
        %720 = vmatmul.f32.gmra.mxu0 %v682
        %v721 = vpop.f32.mrf.mxu0
        %v722 = vadd.f32 %v381, %v721
        %723 = vdwg.mxu0
        %v726 = vrot.slane %v722, 4
        %vm727 = vcmask 1043456
        %v728 = vsel %vm727, %v702, %v726
        %730 = vst [vmem:[%s326] sm:$0x77] %v728
        %s731 = sand.u32 %s225, 1
        %s732 = scalar_lea.sflag [#allocation3], %s731
        %s733 = sand.u32 %s225, 1
        %s734 = smul.addr %s733, 8
        %s735 = scalar_lea.vmem [#allocation2], %s734
        // Predicated region
        $region57: #{tpu_custom_call.1} parent=55 // pred_check
          %p736 = pneg %p235
        $region58: #{tpu_custom_call.1} parent=55 // pred_check_branch
          %738 = sbr.rel (%p736) target = $region60
        $region59: #{tpu_custom_call.1} parent=55 // pred_region
          %s739 = smul.u32 2, %s23
          %741 = vsyncadd %s732, 0
          %s742 = smul.addr %s739, 4
          %s743 = scalar_lea.hbm %s9, %s742
          %s745 = sshll.u32 %s735, 4
          %s746 = int_to_ptr.vmem [resolvable:$true] %s745
          %s747 = sshll.u32 %s743, 4
          %s748 = int_to_ptr.hbm [resolvable:$true] %s747
          %750 = dma.vmem_to_hbm [thread:$0]  %s746, 128, %s748, %s732
        $region60: #{tpu_custom_call.1} parent=55 // pred_fallthru
          _
      $region56: #{tpu_custom_call.1} parent=5 // pred_fallthru
        _
      %p751 = scmp.le.s32.totalorder 2, %s18
      // Predicated region
      $region61: #{tpu_custom_call.1} parent=5 // pred_check
        %p752 = pneg %p751
      $region62: #{tpu_custom_call.1} parent=5 // pred_check_branch
        %754 = sbr.rel (%p752) target = $region64
      $region63: #{tpu_custom_call.1} parent=5 // pred_region
        %s755 = ssub.s32 %s18, 2
        // Predicated region
        $region65: #{tpu_custom_call.1} parent=63 // pred_check
          %p756 = pneg %p241
        $region66: #{tpu_custom_call.1} parent=63 // pred_check_branch
          %758 = sbr.rel (%p756) target = $region68
        $region67: #{tpu_custom_call.1} parent=63 // pred_region
          %s759 = sand.u32 %s226, 1
          %s760 = scalar_lea.sflag [#allocation3], %s759
          %s761 = sand.u32 %s226, 1
          %s762 = smul.addr %s761, 8
          %s763 = scalar_lea.vmem [#allocation2], %s762
          %765 = dma.done %s760, 128
        $region68: #{tpu_custom_call.1} parent=63 // pred_fallthru
          _
      $region64: #{tpu_custom_call.1} parent=5 // pred_fallthru
        _
    $region6: #{tpu_custom_call.1} parent=1 // loop_footer
      %s22 = sadd.s32 1, %s18
    $region7: #{tpu_custom_call.1} parent=1 // loop_footer_branch
      %17 = sbr.rel target = $region3
    $region8: #{tpu_custom_call.1} parent=1 // loop_exit
      _
    %766 = vsyncpa [#allocation3], 1
    %s767 = scalar_lea.sflag [#allocation3], 1
    %768 = vsyncpa %s767, 1

</llo_original>
